<compile_context>
chip_gen: v7x
topology: tpu7x:2x2x1
jax: 0.10.0
libtpu: 0.0.40
codegen_flags: <defaults>
</compile_context>

<pallas_src>
import jax
import jax.numpy as jnp
from jax.experimental import pallas as pl
from jax.experimental.pallas import tpu as pltpu

HIDDEN = 128   # per-tower hidden width (nn.Linear(d_in, 128))
LANE = 128     # TPU lane width


def _round_up(x, m):
    return (x + m - 1) // m * m


# ---------------------------------------------------------------------------
# Kernel: one batch tile of the fused two-tower MLP.
#   user/item features arrive as f32 and are cast to bf16 in-kernel (MXU
#   operands), accumulation is f32, bias + ReLU in f32, output slab bf16.
# ---------------------------------------------------------------------------
def _fused_towers_kernel(u_ref, i_ref,
                         uw1_ref, ub1_ref, iw1_ref, ib1_ref,
                         uw2_ref, iw2_ref, b2_ref, o_ref):
    # Layer 1, user tower: (tb, ud) @ (ud, 128) -> f32, +bias, ReLU, -> bf16
    h_u = jnp.dot(u_ref[...].astype(jnp.bfloat16), uw1_ref[...],
                  preferred_element_type=jnp.float32)
    h_u = jnp.maximum(h_u + ub1_ref[...], 0.0).astype(jnp.bfloat16)
    # Layer 1, item tower: (tb, id) @ (id, 128)
    h_i = jnp.dot(i_ref[...].astype(jnp.bfloat16), iw1_ref[...],
                  preferred_element_type=jnp.float32)
    h_i = jnp.maximum(h_i + ib1_ref[...], 0.0).astype(jnp.bfloat16)
    # Layer 2: both towers write disjoint lane ranges of one lane-dense slab.
    out = (jnp.dot(h_u, uw2_ref[...], preferred_element_type=jnp.float32)
           + jnp.dot(h_i, iw2_ref[...], preferred_element_type=jnp.float32)
           + b2_ref[...])
    o_ref[...] = out.astype(o_ref.dtype)


# ---------------------------------------------------------------------------
# Parameter init (PyTorch nn.Linear-style) and packing for the kernel.
# ---------------------------------------------------------------------------
def init_params(key, user_dim, item_dim, embedding_dim, hidden=HIDDEN):
    """Per-tower params: W stored (in, out), b stored (1, out)."""
    def linear(k, fan_in, fan_out):
        kw, kb = jax.random.split(k)
        bound = 1.0 / float(fan_in) ** 0.5
        w = jax.random.uniform(kw, (fan_in, fan_out), jnp.float32, -bound, bound)
        b = jax.random.uniform(kb, (1, fan_out), jnp.float32, -bound, bound)
        return w, b

    ks = jax.random.split(key, 4)
    u_w1, u_b1 = linear(ks[0], user_dim, hidden)
    u_w2, u_b2 = linear(ks[1], hidden, embedding_dim)
    i_w1, i_b1 = linear(ks[2], item_dim, hidden)
    i_w2, i_b2 = linear(ks[3], hidden, embedding_dim)   # fixed: fan_in = hidden
    return {
        "user": {"w1": u_w1, "b1": u_b1, "w2": u_w2, "b2": u_b2},
        "item": {"w1": i_w1, "b1": i_b1, "w2": i_w2, "b2": i_b2},
    }


def pack_params(params, embedding_dim, hidden=HIDDEN):
    """bf16 weights; layer-2 weights/bias placed in disjoint lanes of one slab."""
    n_pad = _round_up(2 * embedding_dim, LANE)   # 128-lane-dense output slab

    u_w2p = jnp.zeros((hidden, n_pad), jnp.float32)
    u_w2p = u_w2p.at[:, :embedding_dim].set(params["user"]["w2"])
    i_w2p = jnp.zeros((hidden, n_pad), jnp.float32)
    i_w2p = i_w2p.at[:, embedding_dim:2 * embedding_dim].set(params["item"]["w2"])
    b2p = jnp.zeros((1, n_pad), jnp.float32)
    b2p = b2p.at[:, :embedding_dim].set(params["user"]["b2"])
    b2p = b2p.at[:, embedding_dim:2 * embedding_dim].set(params["item"]["b2"])

    return {
        "u_w1": params["user"]["w1"].astype(jnp.bfloat16),
        "u_b1": params["user"]["b1"].astype(jnp.float32),
        "i_w1": params["item"]["w1"].astype(jnp.bfloat16),
        "i_b1": params["item"]["b1"].astype(jnp.float32),
        "u_w2": u_w2p.astype(jnp.bfloat16),
        "i_w2": i_w2p.astype(jnp.bfloat16),
        "b2": b2p,                                # f32 bias slab
    }


# ---------------------------------------------------------------------------
# Fused forward: one pallas_call for both towers.
# ---------------------------------------------------------------------------
def two_tower_forward(user_x, item_x, packed, *, embedding_dim, block_b=2048):
    B, user_dim = user_x.shape
    item_dim = item_x.shape[1]
    hidden = packed["u_w1"].shape[1]
    n_pad = packed["u_w2"].shape[1]

    # Batch tiling: split B evenly over cdiv(B, block_b) tiles (>=2 when B>=16 so
    # the grid shards across v7x dual TensorCores / v6e megacore), rounded up to
    # 8-row sublane multiples -> padding waste stays O(8 rows / tile).
    num_tiles = pl.cdiv(B, block_b)
    if B >= 16:
        num_tiles = max(num_tiles, 2)
    tb = _round_up(pl.cdiv(B, num_tiles), 8)
    b_pad = tb * num_tiles

    if b_pad != B:
        user_x = jnp.pad(user_x, ((0, b_pad - B), (0, 0)))
        item_x = jnp.pad(item_x, ((0, b_pad - B), (0, 0)))

    flops = 2 * b_pad * ((user_dim + item_dim) * hidden + 2 * hidden * n_pad)
    bytes_accessed = (
        b_pad * (user_dim + item_dim) * 4                       # f32 feature inputs
        + (packed["u_w1"].size + packed["i_w1"].size
           + packed["u_w2"].size + packed["i_w2"].size) * 2     # bf16 weights
        + (packed["u_b1"].size + packed["i_b1"].size + packed["b2"].size) * 4
        + b_pad * n_pad * 2                                     # bf16 output slab
    )

    out = pl.pallas_call(
        _fused_towers_kernel,
        out_shape=jax.ShapeDtypeStruct((b_pad, n_pad), jnp.bfloat16),
        grid_spec=pltpu.PrefetchScalarGridSpec(
            num_scalar_prefetch=0,
            grid=(num_tiles,),
            in_specs=[
                pl.BlockSpec((tb, user_dim), lambda i: (i, 0)),     # user feats (f32)
                pl.BlockSpec((tb, item_dim), lambda i: (i, 0)),     # item feats (f32)
                pl.BlockSpec((user_dim, hidden), lambda i: (0, 0)),  # weights: VMEM-resident
                pl.BlockSpec((1, hidden), lambda i: (0, 0)),
                pl.BlockSpec((item_dim, hidden), lambda i: (0, 0)),
                pl.BlockSpec((1, hidden), lambda i: (0, 0)),
                pl.BlockSpec((hidden, n_pad), lambda i: (0, 0)),
                pl.BlockSpec((hidden, n_pad), lambda i: (0, 0)),
                pl.BlockSpec((1, n_pad), lambda i: (0, 0)),
            ],
            out_specs=pl.BlockSpec((tb, n_pad), lambda i: (i, 0)),
        ),
        compiler_params=pltpu.CompilerParams(
            dimension_semantics=("parallel",),   # megacore / dual-TC sharding
        ),
        cost_estimate=pl.CostEstimate(
            flops=flops, transcendentals=0, bytes_accessed=bytes_accessed),
    )(user_x, item_x,
      packed["u_w1"], packed["u_b1"], packed["i_w1"], packed["i_b1"],
      packed["u_w2"], packed["i_w2"], packed["b2"])

    # Slice the two towers' embeddings out of the lane-dense slab; return f32 to
    # match the PyTorch module's output dtype.
    user_emb = out[:B, :embedding_dim].astype(jnp.float32)
    item_emb = out[:B, embedding_dim:2 * embedding_dim].astype(jnp.float32)
    return user_emb, item_emb


# ---------------------------------------------------------------------------
# Plain-JAX reference of the same math (bf16 MXU operands, f32 accumulation).
# ---------------------------------------------------------------------------
def _reference_tower(x, w1, b1, w2, b2):
    h = jnp.dot(x.astype(jnp.bfloat16), w1.astype(jnp.bfloat16),
                preferred_element_type=jnp.float32) + b1
    h = jnp.maximum(h, 0.0)
    return jnp.dot(h.astype(jnp.bfloat16), w2.astype(jnp.bfloat16),
                   preferred_element_type=jnp.float32) + b2


if __name__ == "__main__":
    B = 16          # exercises the >=2-tile grid path (2 tiles of 8 rows)
    USER_DIM = 32
    ITEM_DIM = 48
    EMB_DIM = 16

    key = jax.random.PRNGKey(0)
    k_params, k_user, k_item = jax.random.split(key, 3)

    params = init_params(k_params, USER_DIM, ITEM_DIM, EMB_DIM)
    packed = pack_params(params, EMB_DIM)

    user_x = jax.random.normal(k_user, (B, USER_DIM), dtype=jnp.float32)
    item_x = jax.random.normal(k_item, (B, ITEM_DIM), dtype=jnp.float32)

    fwd = jax.jit(two_tower_forward, static_argnames=("embedding_dim", "block_b"))
    user_emb, item_emb = fwd(user_x, item_x, packed, embedding_dim=EMB_DIM)
    jax.block_until_ready((user_emb, item_emb))

    # Correctness vs plain-JAX reference of the same (bf16-matmul, f32-acc) math.
    ref_user = _reference_tower(
        user_x, params["user"]["w1"], params["user"]["b1"],
        params["user"]["w2"], params["user"]["b2"],
    )
    ref_item = _reference_tower(
        item_x, params["item"]["w1"], params["item"]["b1"],
        params["item"]["w2"], params["item"]["b2"],
    )
    assert user_emb.shape == (B, EMB_DIM) and item_emb.shape == (B, EMB_DIM)
    assert jnp.allclose(user_emb, ref_user, atol=2e-2, rtol=2e-2), \
        float(jnp.max(jnp.abs(user_emb - ref_user)))
    assert jnp.allclose(item_emb, ref_item, atol=2e-2, rtol=2e-2), \
        float(jnp.max(jnp.abs(item_emb - ref_item)))

    print("KERNEL_OK")
</pallas_src>

<mosaic_0001>
module attributes {stable_mosaic.version = 11 : i64} {
  func.func @_fused_towers_kernel(%arg0: i32, %arg1: memref<8x32xf32, #tpu.memory_space<vmem>>, %arg2: memref<8x48xf32, #tpu.memory_space<vmem>>, %arg3: memref<32x128xbf16, #tpu.memory_space<vmem>>, %arg4: memref<1x128xf32, #tpu.memory_space<vmem>>, %arg5: memref<48x128xbf16, #tpu.memory_space<vmem>>, %arg6: memref<1x128xf32, #tpu.memory_space<vmem>>, %arg7: memref<128x128xbf16, #tpu.memory_space<vmem>>, %arg8: memref<128x128xbf16, #tpu.memory_space<vmem>>, %arg9: memref<1x128xf32, #tpu.memory_space<vmem>>, %arg10: memref<8x128xbf16, #tpu.memory_space<vmem>>) attributes {dimension_semantics = [#tpu.dimension_semantics<parallel>], iteration_bounds = array<i64: 2>, scalar_prefetch = 0 : i64, scratch_operands = 0 : i64, tpu.core_type = #tpu.core_type<tc>, window_params = [{transform_indices = @transform_0, window_bounds = array<i64: 8, 32>}, {transform_indices = @transform_1, window_bounds = array<i64: 8, 48>}, {pipeline_mode = #tpu.pipeline_mode<synchronous>, transform_indices = @transform_2, window_bounds = array<i64: 32, 128>}, {pipeline_mode = #tpu.pipeline_mode<synchronous>, transform_indices = @transform_3, window_bounds = array<i64: 1, 128>}, {pipeline_mode = #tpu.pipeline_mode<synchronous>, transform_indices = @transform_4, window_bounds = array<i64: 48, 128>}, {pipeline_mode = #tpu.pipeline_mode<synchronous>, transform_indices = @transform_5, window_bounds = array<i64: 1, 128>}, {pipeline_mode = #tpu.pipeline_mode<synchronous>, transform_indices = @transform_6, window_bounds = array<i64: 128, 128>}, {pipeline_mode = #tpu.pipeline_mode<synchronous>, transform_indices = @transform_7, window_bounds = array<i64: 128, 128>}, {pipeline_mode = #tpu.pipeline_mode<synchronous>, transform_indices = @transform_8, window_bounds = array<i64: 1, 128>}, {transform_indices = @transform_9, window_bounds = array<i64: 8, 128>}]} {
    %c0 = arith.constant 0 : index
    %c0_0 = arith.constant 0 : index
    %0 = vector.load %arg1[%c0, %c0_0] : memref<8x32xf32, #tpu.memory_space<vmem>>, vector<8x32xf32>
    %1 = arith.truncf %0 : vector<8x32xf32> to vector<8x32xbf16>
    %c0_1 = arith.constant 0 : index
    %c0_2 = arith.constant 0 : index
    %2 = vector.load %arg3[%c0_1, %c0_2] : memref<32x128xbf16, #tpu.memory_space<vmem>>, vector<32x128xbf16>
    %cst = arith.constant dense<0.000000e+00> : vector<8x128xf32>
    %3 = tpu.matmul %1, %2, %cst {dimension_numbers = #tpu.dot_dimension_numbers<[1], [0], [0], [1], [0, 0, 1, 1], [], []>} : vector<8x32xbf16>, vector<32x128xbf16>, vector<8x128xf32> -> vector<8x128xf32>
    %c0_3 = arith.constant 0 : index
    %c0_4 = arith.constant 0 : index
    %4 = vector.load %arg4[%c0_3, %c0_4] : memref<1x128xf32, #tpu.memory_space<vmem>>, vector<1x128xf32>
    %5 = vector.broadcast %4 : vector<1x128xf32> to vector<8x128xf32>
    %6 = arith.addf %3, %5 : vector<8x128xf32>
    %cst_5 = arith.constant 0.000000e+00 : f32
    %7 = vector.broadcast %cst_5 : f32 to vector<8x128xf32>
    %8 = arith.maximumf %6, %7 : vector<8x128xf32>
    %9 = arith.truncf %8 : vector<8x128xf32> to vector<8x128xbf16>
    %c0_6 = arith.constant 0 : index
    %c0_7 = arith.constant 0 : index
    %10 = vector.load %arg2[%c0_6, %c0_7] : memref<8x48xf32, #tpu.memory_space<vmem>>, vector<8x48xf32>
    %11 = arith.truncf %10 : vector<8x48xf32> to vector<8x48xbf16>
    %c0_8 = arith.constant 0 : index
    %c0_9 = arith.constant 0 : index
    %12 = vector.load %arg5[%c0_8, %c0_9] : memref<48x128xbf16, #tpu.memory_space<vmem>>, vector<48x128xbf16>
    %cst_10 = arith.constant dense<0.000000e+00> : vector<8x128xf32>
    %13 = tpu.matmul %11, %12, %cst_10 {dimension_numbers = #tpu.dot_dimension_numbers<[1], [0], [0], [1], [0, 0, 1, 1], [], []>} : vector<8x48xbf16>, vector<48x128xbf16>, vector<8x128xf32> -> vector<8x128xf32>
    %c0_11 = arith.constant 0 : index
    %c0_12 = arith.constant 0 : index
    %14 = vector.load %arg6[%c0_11, %c0_12] : memref<1x128xf32, #tpu.memory_space<vmem>>, vector<1x128xf32>
    %15 = vector.broadcast %14 : vector<1x128xf32> to vector<8x128xf32>
    %16 = arith.addf %13, %15 : vector<8x128xf32>
    %cst_13 = arith.constant 0.000000e+00 : f32
    %17 = vector.broadcast %cst_13 : f32 to vector<8x128xf32>
    %18 = arith.maximumf %16, %17 : vector<8x128xf32>
    %19 = arith.truncf %18 : vector<8x128xf32> to vector<8x128xbf16>
    %c0_14 = arith.constant 0 : index
    %c0_15 = arith.constant 0 : index
    %20 = vector.load %arg7[%c0_14, %c0_15] : memref<128x128xbf16, #tpu.memory_space<vmem>>, vector<128x128xbf16>
    %cst_16 = arith.constant dense<0.000000e+00> : vector<8x128xf32>
    %21 = tpu.matmul %9, %20, %cst_16 {dimension_numbers = #tpu.dot_dimension_numbers<[1], [0], [0], [1], [0, 0, 1, 1], [], []>} : vector<8x128xbf16>, vector<128x128xbf16>, vector<8x128xf32> -> vector<8x128xf32>
    %c0_17 = arith.constant 0 : index
    %c0_18 = arith.constant 0 : index
    %22 = vector.load %arg8[%c0_17, %c0_18] : memref<128x128xbf16, #tpu.memory_space<vmem>>, vector<128x128xbf16>
    %cst_19 = arith.constant dense<0.000000e+00> : vector<8x128xf32>
    %23 = tpu.matmul %19, %22, %cst_19 {dimension_numbers = #tpu.dot_dimension_numbers<[1], [0], [0], [1], [0, 0, 1, 1], [], []>} : vector<8x128xbf16>, vector<128x128xbf16>, vector<8x128xf32> -> vector<8x128xf32>
    %24 = arith.addf %21, %23 : vector<8x128xf32>
    %c0_20 = arith.constant 0 : index
    %c0_21 = arith.constant 0 : index
    %25 = vector.load %arg9[%c0_20, %c0_21] : memref<1x128xf32, #tpu.memory_space<vmem>>, vector<1x128xf32>
    %26 = vector.broadcast %25 : vector<1x128xf32> to vector<8x128xf32>
    %27 = arith.addf %24, %26 : vector<8x128xf32>
    %28 = arith.truncf %27 : vector<8x128xf32> to vector<8x128xbf16>
    %c0_22 = arith.constant 0 : index
    %c0_23 = arith.constant 0 : index
    %29 = vector.load %arg10[%c0_22, %c0_23] : memref<8x128xbf16, #tpu.memory_space<vmem>>, vector<8x128xbf16>
    tpu.vector_store %arg10[%c0_22, %c0_23], %28 {strides = array<i32>} : memref<8x128xbf16, #tpu.memory_space<vmem>>, vector<8x128xbf16>,
    return
  }
  func.func @transform_0(%arg0: i32) -> (i32, i32) {
    %c0_i32 = arith.constant 0 : i32
    %c0_i32_0 = arith.constant 0 : i32
    return %arg0, %c0_i32 : i32, i32
  }
  func.func @transform_1(%arg0: i32) -> (i32, i32) {
    %c0_i32 = arith.constant 0 : i32
    %c0_i32_0 = arith.constant 0 : i32
    return %arg0, %c0_i32 : i32, i32
  }
  func.func @transform_2(%arg0: i32) -> (i32, i32) {
    %c0_i32 = arith.constant 0 : i32
    %c0_i32_0 = arith.constant 0 : i32
    %c0_i32_1 = arith.constant 0 : i32
    return %c0_i32, %c0_i32_0 : i32, i32
  }
  func.func @transform_3(%arg0: i32) -> (i32, i32) {
    %c0_i32 = arith.constant 0 : i32
    %c0_i32_0 = arith.constant 0 : i32
    %c0_i32_1 = arith.constant 0 : i32
    return %c0_i32, %c0_i32_0 : i32, i32
  }
  func.func @transform_4(%arg0: i32) -> (i32, i32) {
    %c0_i32 = arith.constant 0 : i32
    %c0_i32_0 = arith.constant 0 : i32
    %c0_i32_1 = arith.constant 0 : i32
    return %c0_i32, %c0_i32_0 : i32, i32
  }
  func.func @transform_5(%arg0: i32) -> (i32, i32) {
    %c0_i32 = arith.constant 0 : i32
    %c0_i32_0 = arith.constant 0 : i32
    %c0_i32_1 = arith.constant 0 : i32
    return %c0_i32, %c0_i32_0 : i32, i32
  }
  func.func @transform_6(%arg0: i32) -> (i32, i32) {
    %c0_i32 = arith.constant 0 : i32
    %c0_i32_0 = arith.constant 0 : i32
    %c0_i32_1 = arith.constant 0 : i32
    return %c0_i32, %c0_i32_0 : i32, i32
  }
  func.func @transform_7(%arg0: i32) -> (i32, i32) {
    %c0_i32 = arith.constant 0 : i32
    %c0_i32_0 = arith.constant 0 : i32
    %c0_i32_1 = arith.constant 0 : i32
    return %c0_i32, %c0_i32_0 : i32, i32
  }
  func.func @transform_8(%arg0: i32) -> (i32, i32) {
    %c0_i32 = arith.constant 0 : i32
    %c0_i32_0 = arith.constant 0 : i32
    %c0_i32_1 = arith.constant 0 : i32
    return %c0_i32, %c0_i32_0 : i32, i32
  }
  func.func @transform_9(%arg0: i32) -> (i32, i32) {
    %c0_i32 = arith.constant 0 : i32
    %c0_i32_0 = arith.constant 0 : i32
    return %arg0, %c0_i32 : i32, i32
  }
}

</mosaic_0001>

<llo_original>
// kernel: two_tower_forward.1
$region0: #{two_tower_forward.1}
  #allocation0 [shape = 'u32[]', space=smem, size = 0x4, offset = 0x4, fixed_abs, tag = 'smem constant byte address 0x4 - core index']
  #allocation1 [shape = 'u32[144,128]{1,0:T(1,128)}', space=vmem, size = 0x12000, scoped, tag = 'internal scratch']
  %s0 = inlined_call_operand.hbm [shape: f32[16,32], index: 0, kind: input, shape index: {}]
  %s1 = inlined_call_operand.hbm [shape: f32[16,48], index: 1, kind: input, shape index: {}]
  %s2 = inlined_call_operand.vmem [shape: bf16[32,128], index: 2, kind: input, shape index: {}]
  %s3 = inlined_call_operand.vmem [shape: f32[1,128], index: 3, kind: input, shape index: {}]
  %s4 = inlined_call_operand.hbm [shape: bf16[48,128], index: 4, kind: input, shape index: {}]
  %s5 = inlined_call_operand.vmem [shape: f32[1,128], index: 5, kind: input, shape index: {}]
  %s6 = inlined_call_operand.hbm [shape: bf16[128,128], index: 6, kind: input, shape index: {}]
  %s7 = inlined_call_operand.hbm [shape: bf16[128,128], index: 7, kind: input, shape index: {}]
  %s8 = inlined_call_operand.vmem [shape: f32[1,128], index: 8, kind: input, shape index: {}]
  %s9 = inlined_call_operand.vmem [shape: bf16[16,128], index: 9, kind: output, shape index: {}]
  %s10 = sld [smem:[#allocation0]]
  $region89: #{two_tower_forward.1} parent=0
    _
  %s12 = ssub.s32 1, %s10
  %s13 = scalar_select 0, %s12, %s10
  $region1: #{two_tower_forward.1} parent=0
    #allocation2 [shape = 'u8[8192]{0}', space=vmem, size = 0x2000, scoped, tag = 'input window, operand 0']
    #allocation3 [shape = 's32[2]{0}', space=sflag, size = 0x8, scoped, tag = 'scoped memory for two_tower_forward.1']
    #allocation4 [shape = 'u8[8192]{0}', space=vmem, size = 0x2000, scoped, tag = 'input window, operand 1']
    #allocation5 [shape = 's32[2]{0}', space=sflag, size = 0x8, scoped, tag = 'scoped memory for two_tower_forward.1']
    #allocation6 [shape = 'u8[12288]{0}', space=vmem, size = 0x3000, scoped, tag = 'input window, operand 4, single buffered']
    #allocation7 [shape = 'u8[32768]{0}', space=vmem, size = 0x8000, scoped, tag = 'input window, operand 6, single buffered']
    #allocation8 [shape = 's32[1]{0}', space=sflag, size = 0x4, scoped, tag = 'scoped memory for two_tower_forward.1']
    #allocation9 [shape = 'u8[32768]{0}', space=vmem, size = 0x8000, scoped, tag = 'input window, operand 7, single buffered']
    %14 = vsyncpa [#allocation3], 0
    %s15 = scalar_lea.sflag [#allocation3], 1
    %16 = vsyncpa %s15, 0
    %17 = vsyncpa [#allocation5], 0
    %s18 = scalar_lea.sflag [#allocation5], 1
    %19 = vsyncpa %s18, 0
    %20 = vsyncpa [#allocation8], 0
    loop: start=0, step=1, limit=4
    $region2: #{two_tower_forward.1} parent=1 // loop_pre_header
      _
    $region3: #{two_tower_forward.1} parent=1 // loop_header
      %s22 = sphi 0, %s26
      %p23 = scmp.ge.s32.totalorder %s22, 4
      %s32 = sphi 0, %s34
      %s35 = sphi 0, %s32
      %s36 = sphi 0, %s35
      %s52 = sphi 0, %s36
      %s58 = sphi 0, %s60
      %s61 = sphi 0, %s58
      %s62 = sphi 0, %s61
      %s78 = sphi 0, %s62
      %s82 = sphi 0, %s82
      %s84 = sphi 0, %s82
      %s85 = sphi 0, %s84
      %s99 = sphi 0, %s85
      %s103 = sphi 0, %s103
      %s105 = sphi 0, %s103
      %s106 = sphi 0, %s105
      %s120 = sphi 0, %s106
      %s124 = sphi 0, %s124
      %s126 = sphi 0, %s124
      %s127 = sphi 0, %s126
      %s141 = sphi 0, %s127
      %s145 = sphi 0, %s145
      %s147 = sphi 0, %s145
      %s148 = sphi 0, %s147
      %s162 = sphi 0, %s148
      %s166 = sphi 0, %s166
      %s168 = sphi 0, %s166
      %s169 = sphi 0, %s168
      %s183 = sphi 0, %s169
      %s187 = sphi 0, %s187
      %s189 = sphi 0, %s187
      %s190 = sphi 0, %s189
      %s204 = sphi 0, %s190
      %s208 = sphi 0, %s208
      %s210 = sphi 0, %s208
      %s211 = sphi 0, %s210
      %s225 = sphi 0, %s211
      %s231 = sphi 0, %s233
      %s234 = sphi 0, %s231
      %s235 = sphi 0, %s234
      %s251 = sphi 0, %s235
    $region4: #{two_tower_forward.1} parent=1 // loop_header_branch
      %25 = sbr.rel (%p23) target = $region8
    $region5: #{two_tower_forward.1} parent=1 // loop_body
      %s27 = ssub.s32 %s22, 1
      %s28 = ssub.s32 %s22, 2
      %s29 = sadd.s32 %s22, 1
      %s30 = ssub.s32 %s22, %s29
      %p31 = scmp.eq.s32.totalorder %s30, 0
      %s33 = sadd.s32 %s32, 1
      %s34 = scalar_select %p31, %s32, %s33
      %p37 = pneg %p31
      %p38 = scmp.eq.s32.totalorder %s22, 1
      %p39 = por %p37, %p38
      %p40 = scmp.ne.s32.totalorder %s32, %s35
      %p41 = scmp.eq.s32.totalorder %s22, 0
      %p42 = por %p40, %p41
      %p43 = scmp.ne.s32.totalorder %s32, %s35
      %p44 = scmp.eq.s32.totalorder %s27, 1
      %p45 = por %p43, %p44
      %p46 = scmp.ne.s32.totalorder %s35, %s36
      %p47 = scmp.eq.s32.totalorder %s27, 0
      %p48 = por %p46, %p47
      %p49 = scmp.ne.s32.totalorder %s35, %s36
      %p50 = scmp.eq.s32.totalorder %s28, 1
      %p51 = por %p49, %p50
      %p53 = scmp.ne.s32.totalorder %s36, %s52
      %p54 = scmp.eq.s32.totalorder %s28, 0
      %p55 = por %p53, %p54
      %s56 = ssub.s32 %s22, %s29
      %p57 = scmp.eq.s32.totalorder %s56, 0
      %s59 = sadd.s32 %s58, 1
      %s60 = scalar_select %p57, %s58, %s59
      %p63 = pneg %p57
      %p64 = scmp.eq.s32.totalorder %s22, 1
      %p65 = por %p63, %p64
      %p66 = scmp.ne.s32.totalorder %s58, %s61
      %p67 = scmp.eq.s32.totalorder %s22, 0
      %p68 = por %p66, %p67
      %p69 = scmp.ne.s32.totalorder %s58, %s61
      %p70 = scmp.eq.s32.totalorder %s27, 1
      %p71 = por %p69, %p70
      %p72 = scmp.ne.s32.totalorder %s61, %s62
      %p73 = scmp.eq.s32.totalorder %s27, 0
      %p74 = por %p72, %p73
      %p75 = scmp.ne.s32.totalorder %s61, %s62
      %p76 = scmp.eq.s32.totalorder %s28, 1
      %p77 = por %p75, %p76
      %p79 = scmp.ne.s32.totalorder %s62, %s78
      %p80 = scmp.eq.s32.totalorder %s28, 0
      %p81 = por %p79, %p80
      %s83 = sadd.s32 %s82, 1
      %p86 = scmp.eq.s32.totalorder %s22, 1
      %p87 = scmp.ne.s32.totalorder %s82, %s84
      %p88 = scmp.eq.s32.totalorder %s22, 0
      %p89 = por %p87, %p88
      %p90 = scmp.ne.s32.totalorder %s82, %s84
      %p91 = scmp.eq.s32.totalorder %s27, 1
      %p92 = por %p90, %p91
      %p93 = scmp.ne.s32.totalorder %s84, %s85
      %p94 = scmp.eq.s32.totalorder %s27, 0
      %p95 = por %p93, %p94
      %p96 = scmp.ne.s32.totalorder %s84, %s85
      %p97 = scmp.eq.s32.totalorder %s28, 1
      %p98 = por %p96, %p97
      %p100 = scmp.ne.s32.totalorder %s85, %s99
      %p101 = scmp.eq.s32.totalorder %s28, 0
      %p102 = por %p100, %p101
      %s104 = sadd.s32 %s103, 1
      %p107 = scmp.eq.s32.totalorder %s22, 1
      %p108 = scmp.ne.s32.totalorder %s103, %s105
      %p109 = scmp.eq.s32.totalorder %s22, 0
      %p110 = por %p108, %p109
      %p111 = scmp.ne.s32.totalorder %s103, %s105
      %p112 = scmp.eq.s32.totalorder %s27, 1
      %p113 = por %p111, %p112
      %p114 = scmp.ne.s32.totalorder %s105, %s106
      %p115 = scmp.eq.s32.totalorder %s27, 0
      %p116 = por %p114, %p115
      %p117 = scmp.ne.s32.totalorder %s105, %s106
      %p118 = scmp.eq.s32.totalorder %s28, 1
      %p119 = por %p117, %p118
      %p121 = scmp.ne.s32.totalorder %s106, %s120
      %p122 = scmp.eq.s32.totalorder %s28, 0
      %p123 = por %p121, %p122
      %s125 = sadd.s32 %s124, 1
      %p128 = scmp.eq.s32.totalorder %s22, 1
      %p129 = scmp.ne.s32.totalorder %s124, %s126
      %p130 = scmp.eq.s32.totalorder %s22, 0
      %p131 = por %p129, %p130
      %p132 = scmp.ne.s32.totalorder %s124, %s126
      %p133 = scmp.eq.s32.totalorder %s27, 1
      %p134 = por %p132, %p133
      %p135 = scmp.ne.s32.totalorder %s126, %s127
      %p136 = scmp.eq.s32.totalorder %s27, 0
      %p137 = por %p135, %p136
      %p138 = scmp.ne.s32.totalorder %s126, %s127
      %p139 = scmp.eq.s32.totalorder %s28, 1
      %p140 = por %p138, %p139
      %p142 = scmp.ne.s32.totalorder %s127, %s141
      %p143 = scmp.eq.s32.totalorder %s28, 0
      %p144 = por %p142, %p143
      %s146 = sadd.s32 %s145, 1
      %p149 = scmp.eq.s32.totalorder %s22, 1
      %p150 = scmp.ne.s32.totalorder %s145, %s147
      %p151 = scmp.eq.s32.totalorder %s22, 0
      %p152 = por %p150, %p151
      %p153 = scmp.ne.s32.totalorder %s145, %s147
      %p154 = scmp.eq.s32.totalorder %s27, 1
      %p155 = por %p153, %p154
      %p156 = scmp.ne.s32.totalorder %s147, %s148
      %p157 = scmp.eq.s32.totalorder %s27, 0
      %p158 = por %p156, %p157
      %p159 = scmp.ne.s32.totalorder %s147, %s148
      %p160 = scmp.eq.s32.totalorder %s28, 1
      %p161 = por %p159, %p160
      %p163 = scmp.ne.s32.totalorder %s148, %s162
      %p164 = scmp.eq.s32.totalorder %s28, 0
      %p165 = por %p163, %p164
      %s167 = sadd.s32 %s166, 1
      %p170 = scmp.eq.s32.totalorder %s22, 1
      %p171 = scmp.ne.s32.totalorder %s166, %s168
      %p172 = scmp.eq.s32.totalorder %s22, 0
      %p173 = por %p171, %p172
      %p174 = scmp.ne.s32.totalorder %s166, %s168
      %p175 = scmp.eq.s32.totalorder %s27, 1
      %p176 = por %p174, %p175
      %p177 = scmp.ne.s32.totalorder %s168, %s169
      %p178 = scmp.eq.s32.totalorder %s27, 0
      %p179 = por %p177, %p178
      %p180 = scmp.ne.s32.totalorder %s168, %s169
      %p181 = scmp.eq.s32.totalorder %s28, 1
      %p182 = por %p180, %p181
      %p184 = scmp.ne.s32.totalorder %s169, %s183
      %p185 = scmp.eq.s32.totalorder %s28, 0
      %p186 = por %p184, %p185
      %s188 = sadd.s32 %s187, 1
      %p191 = scmp.eq.s32.totalorder %s22, 1
      %p192 = scmp.ne.s32.totalorder %s187, %s189
      %p193 = scmp.eq.s32.totalorder %s22, 0
      %p194 = por %p192, %p193
      %p195 = scmp.ne.s32.totalorder %s187, %s189
      %p196 = scmp.eq.s32.totalorder %s27, 1
      %p197 = por %p195, %p196
      %p198 = scmp.ne.s32.totalorder %s189, %s190
      %p199 = scmp.eq.s32.totalorder %s27, 0
      %p200 = por %p198, %p199
      %p201 = scmp.ne.s32.totalorder %s189, %s190
      %p202 = scmp.eq.s32.totalorder %s28, 1
      %p203 = por %p201, %p202
      %p205 = scmp.ne.s32.totalorder %s190, %s204
      %p206 = scmp.eq.s32.totalorder %s28, 0
      %p207 = por %p205, %p206
      %s209 = sadd.s32 %s208, 1
      %p212 = scmp.eq.s32.totalorder %s22, 1
      %p213 = scmp.ne.s32.totalorder %s208, %s210
      %p214 = scmp.eq.s32.totalorder %s22, 0
      %p215 = por %p213, %p214
      %p216 = scmp.ne.s32.totalorder %s208, %s210
      %p217 = scmp.eq.s32.totalorder %s27, 1
      %p218 = por %p216, %p217
      %p219 = scmp.ne.s32.totalorder %s210, %s211
      %p220 = scmp.eq.s32.totalorder %s27, 0
      %p221 = por %p219, %p220
      %p222 = scmp.ne.s32.totalorder %s210, %s211
      %p223 = scmp.eq.s32.totalorder %s28, 1
      %p224 = por %p222, %p223
      %p226 = scmp.ne.s32.totalorder %s211, %s225
      %p227 = scmp.eq.s32.totalorder %s28, 0
      %p228 = por %p226, %p227
      %s229 = ssub.s32 %s22, %s29
      %p230 = scmp.eq.s32.totalorder %s229, 0
      %s232 = sadd.s32 %s231, 1
      %s233 = scalar_select %p230, %s231, %s232
      %p236 = pneg %p230
      %p237 = scmp.eq.s32.totalorder %s22, 1
      %p238 = por %p236, %p237
      %p239 = scmp.ne.s32.totalorder %s231, %s234
      %p240 = scmp.eq.s32.totalorder %s22, 0
      %p241 = por %p239, %p240
      %p242 = scmp.ne.s32.totalorder %s231, %s234
      %p243 = scmp.eq.s32.totalorder %s27, 1
      %p244 = por %p242, %p243
      %p245 = scmp.ne.s32.totalorder %s234, %s235
      %p246 = scmp.eq.s32.totalorder %s27, 0
      %p247 = por %p245, %p246
      %p248 = scmp.ne.s32.totalorder %s234, %s235
      %p249 = scmp.eq.s32.totalorder %s28, 1
      %p250 = por %p248, %p249
      %p252 = scmp.ne.s32.totalorder %s235, %s251
      %p253 = scmp.eq.s32.totalorder %s28, 0
      %p254 = por %p252, %p253
      %p255 = scmp.le.s32.totalorder 1, %s22
      %p256 = scmp.lt.s32.totalorder %s22, 3
      %p257 = pnand %p255, %p256
      %p258 = pneg %p257
      // Predicated region
      $region9: #{two_tower_forward.1} parent=5 // pred_check
        _
      $region10: #{two_tower_forward.1} parent=5 // pred_check_branch
        %260 = sbr.rel (%p257) target = $region12
      $region11: #{two_tower_forward.1} parent=5 // pred_region
        %s261 = ssub.s32 %s22, 1
        // Predicated region
        $region13: #{two_tower_forward.1} parent=11 // pred_check
          %p262 = pneg %p95
        $region14: #{two_tower_forward.1} parent=11 // pred_check_branch
          %264 = sbr.rel (%p262) target = $region16
        $region15: #{two_tower_forward.1} parent=11 // pred_region
          _
        $region16: #{two_tower_forward.1} parent=11 // pred_fallthru
          _
        // Predicated region
        $region17: #{two_tower_forward.1} parent=11 // pred_check
          %p265 = pneg %p116
        $region18: #{two_tower_forward.1} parent=11 // pred_check_branch
          %267 = sbr.rel (%p265) target = $region20
        $region19: #{two_tower_forward.1} parent=11 // pred_region
          _
        $region20: #{two_tower_forward.1} parent=11 // pred_fallthru
          _
        // Predicated region
        $region21: #{two_tower_forward.1} parent=11 // pred_check
          %p268 = pneg %p137
        $region22: #{two_tower_forward.1} parent=11 // pred_check_branch
          %270 = sbr.rel (%p268) target = $region24
        $region23: #{two_tower_forward.1} parent=11 // pred_region
          %s272 = ssub.s32 384, 384
          %273 = vsyncadd [#allocation5], %s272
          %s274 = sshll.u32 [#allocation6], 4
          %s275 = int_to_ptr.vmem [resolvable:$true] %s274
          %280 = dma.hbm_to_vmem [thread:$0]  %s4, 384, %s275, [#allocation5], 64, 64, 4
        $region24: #{two_tower_forward.1} parent=11 // pred_fallthru
          _
        // Predicated region
        $region25: #{two_tower_forward.1} parent=11 // pred_check
          %p281 = pneg %p158
        $region26: #{two_tower_forward.1} parent=11 // pred_check_branch
          %283 = sbr.rel (%p281) target = $region28
        $region27: #{two_tower_forward.1} parent=11 // pred_region
          _
        $region28: #{two_tower_forward.1} parent=11 // pred_fallthru
          _
        // Predicated region
        $region29: #{two_tower_forward.1} parent=11 // pred_check
          %p284 = pneg %p179
        $region30: #{two_tower_forward.1} parent=11 // pred_check_branch
          %286 = sbr.rel (%p284) target = $region32
        $region31: #{two_tower_forward.1} parent=11 // pred_region
          %s288 = ssub.s32 1024, 1024
          %289 = vsyncadd [#allocation8], %s288
          %s290 = sshll.u32 [#allocation7], 4
          %s291 = int_to_ptr.vmem [resolvable:$true] %s290
          %296 = dma.hbm_to_vmem [thread:$0]  %s6, 1024, %s291, [#allocation8], 64, 64, 4
        $region32: #{two_tower_forward.1} parent=11 // pred_fallthru
          _
        // Predicated region
        $region33: #{two_tower_forward.1} parent=11 // pred_check
          %p297 = pneg %p200
        $region34: #{two_tower_forward.1} parent=11 // pred_check_branch
          %299 = sbr.rel (%p297) target = $region36
        $region35: #{two_tower_forward.1} parent=11 // pred_region
          %s301 = ssub.s32 1024, 1024
          %302 = vsyncadd [#allocation8], %s301
          %s303 = sshll.u32 [#allocation9], 4
          %s304 = int_to_ptr.vmem [resolvable:$true] %s303
          %309 = dma.hbm_to_vmem [thread:$0]  %s7, 1024, %s304, [#allocation8], 64, 64, 4
        $region36: #{two_tower_forward.1} parent=11 // pred_fallthru
          _
        // Predicated region
        $region37: #{two_tower_forward.1} parent=11 // pred_check
          %p310 = pneg %p221
        $region38: #{two_tower_forward.1} parent=11 // pred_check_branch
          %312 = sbr.rel (%p310) target = $region40
        $region39: #{two_tower_forward.1} parent=11 // pred_region
          _
        $region40: #{two_tower_forward.1} parent=11 // pred_fallthru
          _
      $region12: #{two_tower_forward.1} parent=5 // pred_fallthru
        _
      %p313 = scmp.lt.s32.totalorder %s22, 2
      // Predicated region
      $region41: #{two_tower_forward.1} parent=5 // pred_check
        %p314 = pneg %p313
      $region42: #{two_tower_forward.1} parent=5 // pred_check_branch
        %316 = sbr.rel (%p314) target = $region44
      $region43: #{two_tower_forward.1} parent=5 // pred_region
        // Predicated region
        $region45: #{two_tower_forward.1} parent=43 // pred_check
          %p317 = pneg %p42
        $region46: #{two_tower_forward.1} parent=43 // pred_check_branch
          %319 = sbr.rel (%p317) target = $region48
        $region47: #{two_tower_forward.1} parent=43 // pred_region
          %s320 = sand.u32 %s32, 1
          %s321 = scalar_lea.sflag [#allocation3], %s320
          %s322 = sand.u32 %s32, 1
          %s323 = smul.addr %s322, 8
          %s324 = scalar_lea.vmem [#allocation2], %s323
          %s326 = ssub.s32 128, 128
          %327 = vsyncadd %s321, %s326
          %s328 = smul.addr %s22, 128
          %s329 = scalar_lea.hbm %s0, %s328
          %s331 = sshll.u32 %s324, 4
          %s332 = int_to_ptr.vmem [resolvable:$true] %s331
          %334 = dma.hbm_to_vmem [thread:$0]  %s329, 128, %s332, %s321
        $region48: #{two_tower_forward.1} parent=43 // pred_fallthru
          _
        // Predicated region
        $region49: #{two_tower_forward.1} parent=43 // pred_check
          %p335 = pneg %p68
        $region50: #{two_tower_forward.1} parent=43 // pred_check_branch
          %337 = sbr.rel (%p335) target = $region52
        $region51: #{two_tower_forward.1} parent=43 // pred_region
          %s338 = sand.u32 %s22, 1
          %s339 = scalar_lea.sflag [#allocation5], %s338
          %s340 = sand.u32 %s58, 1
          %s341 = smul.addr %s340, 8
          %s342 = scalar_lea.vmem [#allocation4], %s341
          %s344 = ssub.s32 128, 128
          %345 = vsyncadd %s339, %s344
          %s346 = smul.addr %s22, 128
          %s347 = scalar_lea.hbm %s1, %s346
          %s349 = sshll.u32 %s342, 4
          %s350 = int_to_ptr.vmem [resolvable:$true] %s349
          %352 = dma.hbm_to_vmem [thread:$0]  %s347, 128, %s350, %s339
        $region52: #{two_tower_forward.1} parent=43 // pred_fallthru
          _
      $region44: #{two_tower_forward.1} parent=5 // pred_fallthru
        _
      %p353 = scmp.le.s32.totalorder 1, %s22
      %p354 = scmp.lt.s32.totalorder %s22, 3
      %p355 = pnand %p353, %p354
      %p356 = pneg %p355
      // Predicated region
      $region53: #{two_tower_forward.1} parent=5 // pred_check
        _
      $region54: #{two_tower_forward.1} parent=5 // pred_check_branch
        %358 = sbr.rel (%p355) target = $region56
      $region55: #{two_tower_forward.1} parent=5 // pred_region
        %s359 = ssub.s32 %s22, 1
        %s360 = sand.u32 %s35, 1
        %s361 = scalar_lea.sflag [#allocation3], %s360
        %s362 = sand.u32 %s35, 1
        %s363 = smul.addr %s362, 8
        %s364 = scalar_lea.vmem [#allocation2], %s363
        // Predicated region
        $region57: #{two_tower_forward.1} parent=55 // pred_check
          %p365 = pneg %p48
        $region58: #{two_tower_forward.1} parent=55 // pred_check_branch
          %367 = sbr.rel (%p365) target = $region60
        $region59: #{two_tower_forward.1} parent=55 // pred_region
          %368 = dma.done %s361, 128
        $region60: #{two_tower_forward.1} parent=55 // pred_fallthru
          _
        %s369 = sand.u32 %s27, 1
        %s370 = scalar_lea.sflag [#allocation5], %s369
        %s371 = sand.u32 %s61, 1
        %s372 = smul.addr %s371, 8
        %s373 = scalar_lea.vmem [#allocation4], %s372
        // Predicated region
        $region61: #{two_tower_forward.1} parent=55 // pred_check
          %p374 = pneg %p74
        $region62: #{two_tower_forward.1} parent=55 // pred_check_branch
          %376 = sbr.rel (%p374) target = $region64
        $region63: #{two_tower_forward.1} parent=55 // pred_region
          %377 = dma.done %s370, 128
        $region64: #{two_tower_forward.1} parent=55 // pred_fallthru
          _
        // Predicated region
        $region65: #{two_tower_forward.1} parent=55 // pred_check
          %p378 = pneg %p137
        $region66: #{two_tower_forward.1} parent=55 // pred_check_branch
          %380 = sbr.rel (%p378) target = $region68
        $region67: #{two_tower_forward.1} parent=55 // pred_region
          %381 = dma.done [#allocation5], 384
        $region68: #{two_tower_forward.1} parent=55 // pred_fallthru
          _
        // Predicated region
        $region69: #{two_tower_forward.1} parent=55 // pred_check
          %p382 = pneg %p179
        $region70: #{two_tower_forward.1} parent=55 // pred_check_branch
          %384 = sbr.rel (%p382) target = $region72
        $region71: #{two_tower_forward.1} parent=55 // pred_region
          %385 = dma.done [#allocation8], 1024
        $region72: #{two_tower_forward.1} parent=55 // pred_fallthru
          _
        // Predicated region
        $region73: #{two_tower_forward.1} parent=55 // pred_check
          %p386 = pneg %p200
        $region74: #{two_tower_forward.1} parent=55 // pred_check_branch
          %388 = sbr.rel (%p386) target = $region76
        $region75: #{two_tower_forward.1} parent=55 // pred_region
          %389 = dma.done [#allocation8], 1024
        $region76: #{two_tower_forward.1} parent=55 // pred_fallthru
          _
        %s390 = sand.u32 %s35, 1
        %s391 = scalar_lea.sflag [#allocation3], %s390
        %s392 = sand.u32 %s35, 1
        %s393 = smul.addr %s392, 8
        %s394 = scalar_lea.vmem [#allocation2], %s393
        %p395 = pneg %p48
        %p396 = pneg %p45
        %s397 = sand.u32 %s27, 1
        %s398 = scalar_lea.sflag [#allocation5], %s397
        %s399 = sand.u32 %s61, 1
        %s400 = smul.addr %s399, 8
        %s401 = scalar_lea.vmem [#allocation4], %s400
        %p402 = pneg %p74
        %p403 = pneg %p71
        %p404 = pneg %p95
        %p405 = pneg %p92
        %p406 = pneg %p116
        %p407 = pneg %p113
        %p408 = pneg %p137
        %p409 = pneg %p134
        %p410 = pneg %p158
        %p411 = pneg %p155
        %p412 = pneg %p179
        %p413 = pneg %p176
        %p414 = pneg %p200
        %p415 = pneg %p197
        %p416 = pneg %p221
        %p417 = pneg %p218
        %p418 = pneg %p247
        %p419 = pneg %p244
        %p420 = scmp.lt.s32.totalorder %s27, 1
        %s421 = scalar_select %p420, %s27, 1
        %s422 = smul.addr %s421, 4
        %s423 = scalar_lea.vmem %s9, %s422
        %p424 = scmp.lt.s32.totalorder %s27, 1
        %s425 = scalar_select %p424, %s27, 1
        %s426 = smul.addr %s425, 4
        %s427 = scalar_lea.vmem %s9, %s426
        %v429 = vld [vmem:[%s364] sm:$0xff]
        %v430 = vpack.c.bf16 %v429, %v429
        %v431 = vld [vmem:[%s2] sm:$0xf]
        %v432 = vld [vmem:[%s2 + $0x4] sm:$0xf]
        %v433 = vld [vmem:[%s2 + $0x8] sm:$0xf]
        %v434 = vld [vmem:[%s2 + $0xc] sm:$0xf]
        %v435 = vld [vmem:[%s3] sm:$0x1]
        %v437 = vlaneseq
        %v438 = vshrl.u32 %v437, 7
        %v439 = vsub.s32 0, %v438
        %v440 = vrot.slane %v435, %v439
        %v446 = vunpack.c.l.b16 %v431
        %v447 = vunpack.c.l.b16 %v432
        %v448 = vunpack.c.l.b16 %v433
        %v449 = vunpack.c.l.b16 %v434
        %v450 = vpack.c.b16 %v447, %v446
        %v451 = vpack.c.b16 %v449, %v448
        %vm454 = vcmask 261120
        %v456 = vsel %vm454, %v430, 0
        %458 = vmatprep.subr.bf16.mxu0 0
        %459 = vmatpush1.bf16.msra.mxu0 %v450
        %460 = vmatprep.subr.bf16.mxu0 0
        %461 = vmatpush1.bf16.msra.mxu0 %v451
        %462 = vmatprep.subr.bf16.mxu0 0
        %463 = vmatpush1.bf16.msra.mxu0 0
        %464 = vmatprep.subr.bf16.mxu0 0
        %465 = vmatpush1.bf16.msra.mxu0 0
        %466 = vmatprep.subr.bf16.mxu0 0
        %467 = vmatpush1.bf16.msra.mxu0 0
        %468 = vmatprep.subr.bf16.mxu0 0
        %469 = vmatpush1.bf16.msra.mxu0 0
        %470 = vmatprep.subr.bf16.mxu0 0
        %471 = vmatpush1.bf16.msra.mxu0 0
        %472 = vmatprep.subr.bf16.mxu0 0
        %473 = vmatpush1.bf16.msra.mxu0 0
        %474 = vmatprep.subr.bf16.mxu0 0
        %475 = vmatpush1.bf16.msra.mxu0 0
        %476 = vmatprep.subr.bf16.mxu0 0
        %477 = vmatpush1.bf16.msra.mxu0 0
        %478 = vmatprep.subr.bf16.mxu0 0
        %479 = vmatpush1.bf16.msra.mxu0 0
        %480 = vmatprep.subr.bf16.mxu0 0
        %481 = vmatpush1.bf16.msra.mxu0 0
        %482 = vmatprep.subr.bf16.mxu0 0
        %483 = vmatpush1.bf16.msra.mxu0 0
        %484 = vmatprep.subr.bf16.mxu0 0
        %485 = vmatpush1.bf16.msra.mxu0 0
        %486 = vmatprep.subr.bf16.mxu0 0
        %487 = vmatpush1.bf16.msra.mxu0 0
        %488 = vmatprep.subr.bf16.mxu0 0
        %489 = vmatpush1.bf16.msra.mxu0 0
        %490 = vmatprep.mubr.bf16.mxu0 0
        %491 = vmatmul.mubr.bf16.gmra.mrb[0].mxu0 %v456
        %v492 = vpop.f32.mrb[0].mxu0
        %v493 = vadd.f32 %v440, %v492
        %v494 = vpop.f32.mrb[0].mxu0
        %v495 = vpop.f32.mrb[0].mxu0
        %v496 = vpop.f32.mrb[0].mxu0
        %497 = vdwg.mxu0
        %v498 = vmax.f32 %v493, 0.0
        %v499 = vpack.c.bf16 %v498, %v498
        %v500 = vld [vmem:[%s373] sm:$0xff]
        %v501 = vpack.c.bf16 %v500, %v500
        %v502 = vld [vmem:[#allocation6] sm:$0xf]
        %v503 = vld [vmem:[#allocation6 + $0x4] sm:$0xf]
        %v504 = vld [vmem:[#allocation6 + $0x8] sm:$0xf]
        %v505 = vld [vmem:[#allocation6 + $0xc] sm:$0xf]
        %v506 = vld [vmem:[#allocation6 + $0x10] sm:$0xf]
        %v507 = vld [vmem:[#allocation6 + $0x14] sm:$0xf]
        %v508 = vld [vmem:[%s5] sm:$0x1]
        %v510 = vlaneseq
        %v511 = vshrl.u32 %v510, 7
        %v512 = vsub.s32 0, %v511
        %v513 = vrot.slane %v508, %v512
        %v521 = vunpack.c.l.b16 %v502
        %v522 = vunpack.c.l.b16 %v503
        %v523 = vunpack.c.l.b16 %v504
        %v524 = vunpack.c.l.b16 %v505
        %v525 = vunpack.c.l.b16 %v506
        %v526 = vunpack.c.l.b16 %v507
        %v527 = vpack.c.b16 %v522, %v521
        %v528 = vpack.c.b16 %v524, %v523
        %v529 = vpack.c.b16 %v526, %v525
        %vm533 = vcmask 392192
        %v535 = vsel %vm533, %v501, 0
        %537 = vmatprep.subr.bf16.mxu0 0
        %538 = vmatpush1.bf16.msra.mxu0 %v527
        %539 = vmatprep.subr.bf16.mxu0 0
        %540 = vmatpush1.bf16.msra.mxu0 %v528
        %541 = vmatprep.subr.bf16.mxu0 0
        %542 = vmatpush1.bf16.msra.mxu0 %v529
        %543 = vmatprep.subr.bf16.mxu0 0
        %544 = vmatpush1.bf16.msra.mxu0 0
        %545 = vmatprep.subr.bf16.mxu0 0
        %546 = vmatpush1.bf16.msra.mxu0 0
        %547 = vmatprep.subr.bf16.mxu0 0
        %548 = vmatpush1.bf16.msra.mxu0 0
        %549 = vmatprep.subr.bf16.mxu0 0
        %550 = vmatpush1.bf16.msra.mxu0 0
        %551 = vmatprep.subr.bf16.mxu0 0
        %552 = vmatpush1.bf16.msra.mxu0 0
        %553 = vmatprep.subr.bf16.mxu0 0
        %554 = vmatpush1.bf16.msra.mxu0 0
        %555 = vmatprep.subr.bf16.mxu0 0
        %556 = vmatpush1.bf16.msra.mxu0 0
        %557 = vmatprep.subr.bf16.mxu0 0
        %558 = vmatpush1.bf16.msra.mxu0 0
        %559 = vmatprep.subr.bf16.mxu0 0
        %560 = vmatpush1.bf16.msra.mxu0 0
        %561 = vmatprep.subr.bf16.mxu0 0
        %562 = vmatpush1.bf16.msra.mxu0 0
        %563 = vmatprep.subr.bf16.mxu0 0
        %564 = vmatpush1.bf16.msra.mxu0 0
        %565 = vmatprep.subr.bf16.mxu0 0
        %566 = vmatpush1.bf16.msra.mxu0 0
        %567 = vmatprep.subr.bf16.mxu0 0
        %568 = vmatpush1.bf16.msra.mxu0 0
        %569 = vmatprep.mubr.bf16.mxu0 0
        %570 = vmatmul.mubr.bf16.gmra.mrb[0].mxu0 %v535
        %v571 = vpop.f32.mrb[0].mxu0
        %v572 = vadd.f32 %v513, %v571
        %v573 = vpop.f32.mrb[0].mxu0
        %v574 = vpop.f32.mrb[0].mxu0
        %v575 = vpop.f32.mrb[0].mxu0
        %576 = vdwg.mxu0
        %v577 = vmax.f32 %v572, 0.0
        %v578 = vpack.c.bf16 %v577, %v577
        %v579 = vld [vmem:[#allocation7] sm:$0xf]
        %v580 = vld [vmem:[#allocation7 + $0x4] sm:$0xf]
        %v581 = vld [vmem:[#allocation7 + $0x8] sm:$0xf]
        %v582 = vld [vmem:[#allocation7 + $0xc] sm:$0xf]
        %v583 = vld [vmem:[#allocation7 + $0x10] sm:$0xf]
        %v584 = vld [vmem:[#allocation7 + $0x14] sm:$0xf]
        %v585 = vld [vmem:[#allocation7 + $0x18] sm:$0xf]
        %v586 = vld [vmem:[#allocation7 + $0x1c] sm:$0xf]
        %v587 = vld [vmem:[#allocation7 + $0x20] sm:$0xf]
        %v588 = vld [vmem:[#allocation7 + $0x24] sm:$0xf]
        %v589 = vld [vmem:[#allocation7 + $0x28] sm:$0xf]
        %v590 = vld [vmem:[#allocation7 + $0x2c] sm:$0xf]
        %v591 = vld [vmem:[#allocation7 + $0x30] sm:$0xf]
        %v592 = vld [vmem:[#allocation7 + $0x34] sm:$0xf]
        %v593 = vld [vmem:[#allocation7 + $0x38] sm:$0xf]
        %v594 = vld [vmem:[#allocation7 + $0x3c] sm:$0xf]
        %v595 = vld [vmem:[#allocation9] sm:$0xf]
        %v596 = vld [vmem:[#allocation9 + $0x4] sm:$0xf]
        %v597 = vld [vmem:[#allocation9 + $0x8] sm:$0xf]
        %v598 = vld [vmem:[#allocation9 + $0xc] sm:$0xf]
        %v599 = vld [vmem:[#allocation9 + $0x10] sm:$0xf]
        %v600 = vld [vmem:[#allocation9 + $0x14] sm:$0xf]
        %v601 = vld [vmem:[#allocation9 + $0x18] sm:$0xf]
        %v602 = vld [vmem:[#allocation9 + $0x1c] sm:$0xf]
        %v603 = vld [vmem:[#allocation9 + $0x20] sm:$0xf]
        %v604 = vld [vmem:[#allocation9 + $0x24] sm:$0xf]
        %v605 = vld [vmem:[#allocation9 + $0x28] sm:$0xf]
        %v606 = vld [vmem:[#allocation9 + $0x2c] sm:$0xf]
        %v607 = vld [vmem:[#allocation9 + $0x30] sm:$0xf]
        %v608 = vld [vmem:[#allocation9 + $0x34] sm:$0xf]
        %v609 = vld [vmem:[#allocation9 + $0x38] sm:$0xf]
        %v610 = vld [vmem:[#allocation9 + $0x3c] sm:$0xf]
        %v627 = vunpack.c.l.b16 %v595
        %v628 = vunpack.c.l.b16 %v596
        %v629 = vunpack.c.l.b16 %v597
        %v630 = vunpack.c.l.b16 %v598
        %v631 = vunpack.c.l.b16 %v599
        %v632 = vunpack.c.l.b16 %v600
        %v633 = vunpack.c.l.b16 %v601
        %v634 = vunpack.c.l.b16 %v602
        %v635 = vunpack.c.l.b16 %v603
        %v636 = vunpack.c.l.b16 %v604
        %v637 = vunpack.c.l.b16 %v605
        %v638 = vunpack.c.l.b16 %v606
        %v639 = vunpack.c.l.b16 %v607
        %v640 = vunpack.c.l.b16 %v608
        %v641 = vunpack.c.l.b16 %v609
        %v642 = vunpack.c.l.b16 %v610
        %v643 = vpack.c.b16 %v628, %v627
        %v644 = vpack.c.b16 %v630, %v629
        %v645 = vpack.c.b16 %v632, %v631
        %v646 = vpack.c.b16 %v634, %v633
        %v647 = vpack.c.b16 %v636, %v635
        %v648 = vpack.c.b16 %v638, %v637
        %v649 = vpack.c.b16 %v640, %v639
        %v650 = vpack.c.b16 %v642, %v641
        %659 = vmatprep.subr.bf16.mxu0 0
        %660 = vmatpush1.bf16.msra.mxu0 %v643
        %661 = vmatprep.subr.bf16.mxu0 0
        %662 = vmatpush1.bf16.msra.mxu0 %v644
        %663 = vmatprep.subr.bf16.mxu0 0
        %664 = vmatpush1.bf16.msra.mxu0 %v645
        %665 = vmatprep.subr.bf16.mxu0 0
        %666 = vmatpush1.bf16.msra.mxu0 %v646
        %667 = vmatprep.subr.bf16.mxu0 0
        %668 = vmatpush1.bf16.msra.mxu0 %v647
        %669 = vmatprep.subr.bf16.mxu0 0
        %670 = vmatpush1.bf16.msra.mxu0 %v648
        %671 = vmatprep.subr.bf16.mxu0 0
        %672 = vmatpush1.bf16.msra.mxu0 %v649
        %673 = vmatprep.subr.bf16.mxu0 0
        %674 = vmatpush1.bf16.msra.mxu0 %v650
        %675 = vmatprep.subr.bf16.mxu0 0
        %676 = vmatpush1.bf16.msra.mxu0 0
        %677 = vmatprep.subr.bf16.mxu0 0
        %678 = vmatpush1.bf16.msra.mxu0 0
        %679 = vmatprep.subr.bf16.mxu0 0
        %680 = vmatpush1.bf16.msra.mxu0 0
        %681 = vmatprep.subr.bf16.mxu0 0
        %682 = vmatpush1.bf16.msra.mxu0 0
        %683 = vmatprep.subr.bf16.mxu0 0
        %684 = vmatpush1.bf16.msra.mxu0 0
        %685 = vmatprep.subr.bf16.mxu0 0
        %686 = vmatpush1.bf16.msra.mxu0 0
        %687 = vmatprep.subr.bf16.mxu0 0
        %688 = vmatpush1.bf16.msra.mxu0 0
        %689 = vmatprep.subr.bf16.mxu0 0
        %690 = vmatpush1.bf16.msra.mxu0 0
        %691 = vmatprep.mubr.bf16.mxu0 0
        %692 = vmatmul.mubr.bf16.gmra.mrb[0].mxu0 %v578
        %v693 = vpop.f32.mrb[0].mxu0
        %v694 = vadd.f32 0.0, %v693
        %v695 = vpop.f32.mrb[0].mxu0
        %v696 = vpop.f32.mrb[0].mxu0
        %v697 = vpop.f32.mrb[0].mxu0
        %698 = vdwg.mxu0
        %v715 = vunpack.c.l.b16 %v579
        %v716 = vunpack.c.l.b16 %v580
        %v717 = vunpack.c.l.b16 %v581
        %v718 = vunpack.c.l.b16 %v582
        %v719 = vunpack.c.l.b16 %v583
        %v720 = vunpack.c.l.b16 %v584
        %v721 = vunpack.c.l.b16 %v585
        %v722 = vunpack.c.l.b16 %v586
        %v723 = vunpack.c.l.b16 %v587
        %v724 = vunpack.c.l.b16 %v588
        %v725 = vunpack.c.l.b16 %v589
        %v726 = vunpack.c.l.b16 %v590
        %v727 = vunpack.c.l.b16 %v591
        %v728 = vunpack.c.l.b16 %v592
        %v729 = vunpack.c.l.b16 %v593
        %v730 = vunpack.c.l.b16 %v594
        %v731 = vpack.c.b16 %v716, %v715
        %v732 = vpack.c.b16 %v718, %v717
        %v733 = vpack.c.b16 %v720, %v719
        %v734 = vpack.c.b16 %v722, %v721
        %v735 = vpack.c.b16 %v724, %v723
        %v736 = vpack.c.b16 %v726, %v725
        %v737 = vpack.c.b16 %v728, %v727
        %v738 = vpack.c.b16 %v730, %v729
        %747 = vmatprep.subr.bf16.mxu0 0
        %748 = vmatpush1.bf16.msra.mxu0 %v731
        %749 = vmatprep.subr.bf16.mxu0 0
        %750 = vmatpush1.bf16.msra.mxu0 %v732
        %751 = vmatprep.subr.bf16.mxu0 0
        %752 = vmatpush1.bf16.msra.mxu0 %v733
        %753 = vmatprep.subr.bf16.mxu0 0
        %754 = vmatpush1.bf16.msra.mxu0 %v734
        %755 = vmatprep.subr.bf16.mxu0 0
        %756 = vmatpush1.bf16.msra.mxu0 %v735
        %757 = vmatprep.subr.bf16.mxu0 0
        %758 = vmatpush1.bf16.msra.mxu0 %v736
        %759 = vmatprep.subr.bf16.mxu0 0
        %760 = vmatpush1.bf16.msra.mxu0 %v737
        %761 = vmatprep.subr.bf16.mxu0 0
        %762 = vmatpush1.bf16.msra.mxu0 %v738
        %763 = vmatprep.subr.bf16.mxu0 0
        %764 = vmatpush1.bf16.msra.mxu0 0
        %765 = vmatprep.subr.bf16.mxu0 0
        %766 = vmatpush1.bf16.msra.mxu0 0
        %767 = vmatprep.subr.bf16.mxu0 0
        %768 = vmatpush1.bf16.msra.mxu0 0
        %769 = vmatprep.subr.bf16.mxu0 0
        %770 = vmatpush1.bf16.msra.mxu0 0
        %771 = vmatprep.subr.bf16.mxu0 0
        %772 = vmatpush1.bf16.msra.mxu0 0
        %773 = vmatprep.subr.bf16.mxu0 0
        %774 = vmatpush1.bf16.msra.mxu0 0
        %775 = vmatprep.subr.bf16.mxu0 0
        %776 = vmatpush1.bf16.msra.mxu0 0
        %777 = vmatprep.subr.bf16.mxu0 0
        %778 = vmatpush1.bf16.msra.mxu0 0
        %779 = vmatprep.mubr.bf16.mxu0 0
        %780 = vmatmul.mubr.bf16.gmra.mrb[0].mxu0 %v499
        %v781 = vpop.f32.mrb[0].mxu0
        %v782 = vadd.f32 %v694, %v781
        %v783 = vpop.f32.mrb[0].mxu0
        %v784 = vpop.f32.mrb[0].mxu0
        %v785 = vpop.f32.mrb[0].mxu0
        %786 = vdwg.mxu0
        %v787 = vld [vmem:[%s8] sm:$0x1]
        %v789 = vlaneseq
        %v790 = vshrl.u32 %v789, 7
        %v791 = vsub.s32 0, %v790
        %v792 = vrot.slane %v787, %v791
        %v794 = vadd.f32 %v782, %v792
        %v795 = vpack.c.bf16 %v794, %v794
        %796 = vst [vmem:[%s427] sm:$0xf] %v795
        %p797 = scmp.lt.s32.totalorder %s27, 1
        %s798 = scalar_select %p797, %s27, 1
        %s799 = smul.addr %s798, 4
        %s800 = scalar_lea.vmem %s9, %s799
        // Predicated region
        $region77: #{two_tower_forward.1} parent=55 // pred_check
          %p801 = pneg %p244
        $region78: #{two_tower_forward.1} parent=55 // pred_check_branch
          %803 = sbr.rel (%p801) target = $region80
        $region79: #{two_tower_forward.1} parent=55 // pred_region
          _
        $region80: #{two_tower_forward.1} parent=55 // pred_fallthru
          _
      $region56: #{two_tower_forward.1} parent=5 // pred_fallthru
        _
      %p804 = scmp.le.s32.totalorder 2, %s22
      // Predicated region
      $region81: #{two_tower_forward.1} parent=5 // pred_check
        %p805 = pneg %p804
      $region82: #{two_tower_forward.1} parent=5 // pred_check_branch
        %807 = sbr.rel (%p805) target = $region84
      $region83: #{two_tower_forward.1} parent=5 // pred_region
        %s808 = ssub.s32 %s22, 2
        // Predicated region
        $region85: #{two_tower_forward.1} parent=83 // pred_check
          %p809 = pneg %p250
        $region86: #{two_tower_forward.1} parent=83 // pred_check_branch
          %811 = sbr.rel (%p809) target = $region88
        $region87: #{two_tower_forward.1} parent=83 // pred_region
          %p812 = scmp.lt.s32.totalorder %s28, 1
          %s813 = scalar_select %p812, %s28, 1
          %s814 = smul.addr %s813, 4
          %s815 = scalar_lea.vmem %s9, %s814
        $region88: #{two_tower_forward.1} parent=83 // pred_fallthru
          _
      $region84: #{two_tower_forward.1} parent=5 // pred_fallthru
        _
    $region6: #{two_tower_forward.1} parent=1 // loop_footer
      %s26 = sadd.s32 1, %s22
    $region7: #{two_tower_forward.1} parent=1 // loop_footer_branch
      %21 = sbr.rel target = $region3
    $region8: #{two_tower_forward.1} parent=1 // loop_exit
      _
    %816 = vsyncpa [#allocation3], 1
    %s817 = scalar_lea.sflag [#allocation3], 1
    %818 = vsyncpa %s817, 1
    %819 = vsyncpa [#allocation5], 1
    %s820 = scalar_lea.sflag [#allocation5], 1
    %821 = vsyncpa %s820, 1
    %822 = vsyncpa [#allocation8], 1

</llo_original>
